<compile_context>
chip_gen: v7x
topology: tpu7x:2x2x1
jax: 0.10.0
libtpu: 0.0.40
codegen_flags: <defaults>
</compile_context>

<pallas_src>
import jax
import jax.numpy as jnp
from jax.experimental import pallas as pl
from jax.experimental.pallas import tpu as pltpu


TILE_B_MAX = 8192        # up to 4 MiB per f32 input buffer (8 MiB double-buffered)
TILE_B_GRANULE = 1024    # keeps every block (8,128)-aligned and divides TILE_B_MAX
MIN_PALLAS_BATCH = 1024  # below this, kernel-launch overhead dominates -> plain XLA
TARGET_TILES = 4         # aim for >=4 grid steps so v7x's 2 TCs + pipelining have work


def _cdiv(a, b):
    return -(-a // b)


def _pick_tile_b(batch):
    """Largest tile <= TILE_B_MAX that still yields ~TARGET_TILES grid steps."""
    target = _cdiv(batch, TARGET_TILES)
    tile = _cdiv(target, TILE_B_GRANULE) * TILE_B_GRANULE
    return max(TILE_B_GRANULE, min(TILE_B_MAX, tile))


def discr_kernel(x_ref, w_ref, b_ref, o_ref):
    # x_ref: (tile_b, 128) input rows, native dtype (pipelined / double-buffered)
    # w_ref: (128, 1)      fc3 weight as a feature-major column, resident
    # b_ref: (1,)          fc3 bias, SMEM scalar
    # o_ref: (1, tile_b)   sigmoid(fc3(x)) with batch rows on lanes (lane-dense)
    x = x_ref[...].astype(jnp.float32)            # cast on the VPU, not in HBM
    w = w_ref[...].astype(jnp.float32)            # (128, 1)
    b = b_ref[0]
    # Move batch rows onto lanes using the otherwise-idle XLU; features -> sublanes.
    xt = jnp.transpose(x, (1, 0))                 # (128, tile_b)
    # VPU broadcast-multiply + sublane-axis reduce -> lane-dense logits.
    logits = jnp.sum(xt * w, axis=0, keepdims=True) + b      # (1, tile_b) f32
    # Dense EUP sigmoid + dense stores (no per-row masked vst.msk).
    o_ref[...] = jax.nn.sigmoid(logits).astype(o_ref.dtype)


def discr_forward(x, w3, b3):
    """Pallas implementation of Discr.forward.

    x  : (B, ...) with prod(...) == 128, any float dtype (kept native)
    w3 : (1, 128)  fc3 weight (PyTorch out x in layout)
    b3 : (1,)      fc3 bias
    returns (B, 1) float32
    """
    B = x.shape[0]
    x2 = x.reshape(B, -1)                         # native dtype; no f32 copy in HBM
    assert x2.shape[1] == 128, "Discr expects 128 flattened features per sample"
    w3f = w3.reshape(1, 128).astype(jnp.float32)
    b3f = b3.reshape(1).astype(jnp.float32)

    if B < MIN_PALLAS_BATCH:
        # Tiny-batch bypass (perf review): the fixed pallas_call / pipeline cost
        # would swamp a few-KiB problem.  Plain fused XLA does it in one pass.
        logits = jnp.sum(x2.astype(jnp.float32) * w3f, axis=-1, keepdims=True) + b3f
        return jax.nn.sigmoid(logits)

    tile_b = _pick_tile_b(B)                      # tile_b <= B here (B >= granule)
    grid = (pl.cdiv(B, tile_b),)
    w_col = w3f.reshape(128, 1)                   # feature-major column for the kernel

    itemsize = jnp.dtype(x2.dtype).itemsize
    cost = pl.CostEstimate(
        flops=2 * B * 128,                        # mul + add per input element
        transcendentals=B,                        # one exp per sigmoid
        bytes_accessed=B * 128 * itemsize + B * 4 + 128 * 4 + 4,
    )

    out = pl.pallas_call(
        discr_kernel,
        out_shape=jax.ShapeDtypeStruct((1, B), jnp.float32),
        grid=grid,
        in_specs=[
            pl.BlockSpec((tile_b, 128), lambda i: (i, 0)),          # x tiles, pipelined
            pl.BlockSpec((128, 1), lambda i: (0, 0)),               # w3 column, resident
            pl.BlockSpec(memory_space=pltpu.MemorySpace.SMEM),      # bias scalar
        ],
        out_specs=pl.BlockSpec((1, tile_b), lambda i: (0, i)),      # lane-dense slab
        compiler_params=pltpu.CompilerParams(
            dimension_semantics=("parallel",),    # shard batch tiles across v7x's 2 TCs
            vmem_limit_bytes=32 * 1024 * 1024,    # ~2x headroom over worst-case use
        ),
        cost_estimate=cost,
    )(x2, w_col, b3f)

    # (1, B) and (B, 1) share the same flat element order -> free reshape.
    return out.reshape(B, 1)


def init_params(key):
    """Deterministic init mirroring the __init__ shapes of Discr.

    PyTorch nn.Linear default init: U(-1/sqrt(fan_in), 1/sqrt(fan_in)).
    fc1/fc2/dropout are created to mirror the module definition, but the
    reference forward discards their outputs, so only fc3 affects the result.
    """
    k1, k2, k3, k4, k5, k6 = jax.random.split(key, 6)
    bound = 1.0 / jnp.sqrt(128.0)
    return {
        "fc1_w": jax.random.uniform(k1, (128, 128), jnp.float32, -bound, bound),
        "fc1_b": jax.random.uniform(k2, (128,), jnp.float32, -bound, bound),
        "fc2_w": jax.random.uniform(k3, (128, 128), jnp.float32, -bound, bound),
        "fc2_b": jax.random.uniform(k4, (128,), jnp.float32, -bound, bound),
        "fc3_w": jax.random.uniform(k5, (1, 128), jnp.float32, -bound, bound),
        "fc3_b": jax.random.uniform(k6, (1,), jnp.float32, -bound, bound),
    }


if __name__ == "__main__":
    key = jax.random.PRNGKey(0)
    kp, kx1, kx2, kx3 = jax.random.split(key, 4)
    params = init_params(kp)

    def reference(x):
        # Exact PyTorch forward semantics: sigmoid(fc3(flatten(x))).
        xf = x.reshape(x.shape[0], -1)
        logits = jnp.sum(xf * params["fc3_w"], axis=-1, keepdims=True)
        return jax.nn.sigmoid(logits + params["fc3_b"][None, :])

    # 1) Tiny batch consistent with the module (2, 2, 8, 8) -> 128 features.
    #    Exercises the small-batch XLA bypass.
    x_small = jax.random.normal(kx1, (2, 2, 8, 8), dtype=jnp.float32)
    out_small = jax.block_until_ready(
        discr_forward(x_small, params["fc3_w"], params["fc3_b"]))
    assert out_small.shape == (2, 1)
    assert jnp.allclose(out_small, reference(x_small), atol=1e-5, rtol=1e-5)

    # 2) Batch large enough to exercise the Pallas kernel with a ragged last tile.
    x_ragged = jax.random.normal(kx2, (2000, 2, 8, 8), dtype=jnp.float32)
    out_ragged = jax.block_until_ready(
        discr_forward(x_ragged, params["fc3_w"], params["fc3_b"]))
    assert out_ragged.shape == (2000, 1)
    assert jnp.allclose(out_ragged, reference(x_ragged), atol=1e-5, rtol=1e-5)

    # 3) Aligned multi-tile batch (grid of 4 batch tiles, "parallel" axis).
    x_big = jax.random.normal(kx3, (4096, 2, 8, 8), dtype=jnp.float32)
    out_big = jax.block_until_ready(
        discr_forward(x_big, params["fc3_w"], params["fc3_b"]))
    assert out_big.shape == (4096, 1)
    assert jnp.allclose(out_big, reference(x_big), atol=1e-5, rtol=1e-5)

    print("KERNEL_OK")
</pallas_src>

<mosaic_0001>
module attributes {stable_mosaic.version = 11 : i64} {
  func.func @discr_kernel(%arg0: i32, %arg1: memref<1024x128xf32, #tpu.memory_space<vmem>>, %arg2: memref<128x1xf32, #tpu.memory_space<vmem>>, %arg3: memref<1xf32, #tpu.memory_space<smem>>, %arg4: memref<1x1024xf32, #tpu.memory_space<vmem>>) attributes {dimension_semantics = [#tpu.dimension_semantics<parallel>], iteration_bounds = array<i64: 2>, scalar_prefetch = 0 : i64, scratch_operands = 0 : i64, tpu.core_type = #tpu.core_type<tc>, window_params = [{transform_indices = @transform_0, window_bounds = array<i64: 1024, 128>}, {pipeline_mode = #tpu.pipeline_mode<synchronous>, transform_indices = @transform_1, window_bounds = array<i64: 128, 1>}, {transform_indices = @transform_2, window_bounds = array<i64: 1>}, {transform_indices = @transform_3, window_bounds = array<i64: 1, 1024>}]} {
    %c0 = arith.constant 0 : index
    %c0_0 = arith.constant 0 : index
    %0 = vector.load %arg1[%c0, %c0_0] : memref<1024x128xf32, #tpu.memory_space<vmem>>, vector<1024x128xf32>
    %c0_1 = arith.constant 0 : index
    %c0_2 = arith.constant 0 : index
    %1 = vector.load %arg2[%c0_1, %c0_2] : memref<128x1xf32, #tpu.memory_space<vmem>>, vector<128x1xf32>
    %c0_3 = arith.constant 0 : index
    %2 = memref.load %arg3[%c0_3] : memref<1xf32, #tpu.memory_space<smem>>
    %3 = tpu.transpose %0, [1, 0] : vector<1024x128xf32> -> vector<128x1024xf32>
    %4 = vector.broadcast %1 : vector<128x1xf32> to vector<128x1024xf32>
    %5 = arith.mulf %3, %4 : vector<128x1024xf32>
    %cst = arith.constant dense<0.000000e+00> : vector<1024xf32>
    %6 = vector.multi_reduction <add>, %5, %cst [0] : vector<128x1024xf32> to vector<1024xf32>
    %7 = vector.shape_cast %6 : vector<1024xf32> to vector<1x1024xf32>
    %8 = vector.broadcast %2 : f32 to vector<1x1024xf32>
    %9 = arith.addf %7, %8 : vector<1x1024xf32>
    %10 = arith.negf %9 : vector<1x1024xf32>
    %11 = math.exp %10 : vector<1x1024xf32>
    %cst_4 = arith.constant 1.000000e+00 : f32
    %12 = vector.broadcast %cst_4 : f32 to vector<1x1024xf32>
    %13 = arith.addf %12, %11 : vector<1x1024xf32>
    %14 = arith.divf %12, %13 : vector<1x1024xf32>
    %c0_5 = arith.constant 0 : index
    %c0_6 = arith.constant 0 : index
    %15 = vector.load %arg4[%c0_5, %c0_6] : memref<1x1024xf32, #tpu.memory_space<vmem>>, vector<1x1024xf32>
    tpu.vector_store %arg4[%c0_5, %c0_6], %14 {strides = array<i32>} : memref<1x1024xf32, #tpu.memory_space<vmem>>, vector<1x1024xf32>,
    return
  }
  func.func @transform_0(%arg0: i32) -> (i32, i32) {
    %c0_i32 = arith.constant 0 : i32
    %c0_i32_0 = arith.constant 0 : i32
    return %arg0, %c0_i32 : i32, i32
  }
  func.func @transform_1(%arg0: i32) -> (i32, i32) {
    %c0_i32 = arith.constant 0 : i32
    %c0_i32_0 = arith.constant 0 : i32
    %c0_i32_1 = arith.constant 0 : i32
    return %c0_i32, %c0_i32_0 : i32, i32
  }
  func.func @transform_2(%arg0: i32) -> i32 {
    %c0_i32 = arith.constant 0 : i32
    %c0_i32_0 = arith.constant 0 : i32
    return %c0_i32 : i32
  }
  func.func @transform_3(%arg0: i32) -> (i32, i32) {
    %c0_i32 = arith.constant 0 : i32
    %c0_i32_0 = arith.constant 0 : i32
    return %c0_i32, %arg0 : i32, i32
  }
}

</mosaic_0001>

<llo_original>
// kernel: tpu_custom_call.1
$region0: #{tpu_custom_call.1}
  #allocation0 [shape = 'u32[]', space=smem, size = 0x4, offset = 0x4, fixed_abs, tag = 'smem constant byte address 0x4 - core index']
  #allocation1 [shape = 'u32[144,128]{1,0:T(1,128)}', space=vmem, size = 0x12000, scoped, tag = 'internal scratch']
  #allocation2 [shape = 'f32[1]{0:T(128)S(6)}', space=smem, size = 0x200, scoped, tag = 'scoped memory for tpu_custom_call.1']
  %s0 = inlined_call_operand.hbm [shape: f32[2000,128], index: 0, kind: input, shape index: {}]
  %s1 = inlined_call_operand.vmem [shape: f32[128,1], index: 1, kind: input, shape index: {}]
  %s2 = inlined_call_operand.<no memory space> [shape: f32[1], index: 2, kind: input, shape index: {}]
  %s3 = inlined_call_operand.hbm [shape: f32[1,2000], index: 3, kind: output, shape index: {}]
  %s4 = sld [smem:[#allocation0]]
  $region49: #{tpu_custom_call.1} parent=0
    _
  %s6 = ssub.s32 1, %s4
  %s7 = scalar_select 0, %s6, %s4
  %8 = sst [smem:[#allocation2]] %s2
  $region1: #{tpu_custom_call.1} parent=0
    #allocation3 [shape = 'u8[1048576]{0}', space=vmem, size = 0x100000, scoped, tag = 'input window, operand 0']
    #allocation4 [shape = 's32[2]{0}', space=sflag, size = 0x8, scoped, tag = 'scoped memory for tpu_custom_call.1']
    #allocation5 [shape = 's32[2]{0}', space=sflag, size = 0x8, scoped, tag = 'scoped memory for tpu_custom_call.1']
    #allocation6 [shape = 'u8[8192]{0}', space=vmem, size = 0x2000, scoped, tag = 'output window, operand 0']
    %9 = vsyncpa [#allocation4], 0
    %s10 = scalar_lea.sflag [#allocation4], 1
    %11 = vsyncpa %s10, 0
    %12 = vsyncpa [#allocation5], 0
    %s13 = scalar_lea.sflag [#allocation5], 1
    %14 = vsyncpa %s13, 0
    loop: start=0, step=1, limit=4
    $region2: #{tpu_custom_call.1} parent=1 // loop_pre_header
      _
    $region3: #{tpu_custom_call.1} parent=1 // loop_header
      %s16 = sphi 0, %s20
      %p17 = scmp.ge.s32.totalorder %s16, 4
      %s26 = sphi 0, %s28
      %s29 = sphi 0, %s26
      %s30 = sphi 0, %s29
      %s46 = sphi 0, %s30
      %s50 = sphi 0, %s50
      %s52 = sphi 0, %s50
      %s53 = sphi 0, %s52
      %s67 = sphi 0, %s53
      %s71 = sphi 0, %s71
      %s73 = sphi 0, %s71
      %s74 = sphi 0, %s73
      %s88 = sphi 0, %s74
      %s94 = sphi 0, %s96
      %s97 = sphi 0, %s94
      %s98 = sphi 0, %s97
      %s114 = sphi 0, %s98
    $region4: #{tpu_custom_call.1} parent=1 // loop_header_branch
      %19 = sbr.rel (%p17) target = $region8
    $region5: #{tpu_custom_call.1} parent=1 // loop_body
      %s21 = ssub.s32 %s16, 1
      %s22 = ssub.s32 %s16, 2
      %s23 = sadd.s32 %s16, 1
      %s24 = ssub.s32 %s16, %s23
      %p25 = scmp.eq.s32.totalorder %s24, 0
      %s27 = sadd.s32 %s26, 1
      %s28 = scalar_select %p25, %s26, %s27
      %p31 = pneg %p25
      %p32 = scmp.eq.s32.totalorder %s16, 1
      %p33 = por %p31, %p32
      %p34 = scmp.ne.s32.totalorder %s26, %s29
      %p35 = scmp.eq.s32.totalorder %s16, 0
      %p36 = por %p34, %p35
      %p37 = scmp.ne.s32.totalorder %s26, %s29
      %p38 = scmp.eq.s32.totalorder %s21, 1
      %p39 = por %p37, %p38
      %p40 = scmp.ne.s32.totalorder %s29, %s30
      %p41 = scmp.eq.s32.totalorder %s21, 0
      %p42 = por %p40, %p41
      %p43 = scmp.ne.s32.totalorder %s29, %s30
      %p44 = scmp.eq.s32.totalorder %s22, 1
      %p45 = por %p43, %p44
      %p47 = scmp.ne.s32.totalorder %s30, %s46
      %p48 = scmp.eq.s32.totalorder %s22, 0
      %p49 = por %p47, %p48
      %s51 = sadd.s32 %s50, 1
      %p54 = scmp.eq.s32.totalorder %s16, 1
      %p55 = scmp.ne.s32.totalorder %s50, %s52
      %p56 = scmp.eq.s32.totalorder %s16, 0
      %p57 = por %p55, %p56
      %p58 = scmp.ne.s32.totalorder %s50, %s52
      %p59 = scmp.eq.s32.totalorder %s21, 1
      %p60 = por %p58, %p59
      %p61 = scmp.ne.s32.totalorder %s52, %s53
      %p62 = scmp.eq.s32.totalorder %s21, 0
      %p63 = por %p61, %p62
      %p64 = scmp.ne.s32.totalorder %s52, %s53
      %p65 = scmp.eq.s32.totalorder %s22, 1
      %p66 = por %p64, %p65
      %p68 = scmp.ne.s32.totalorder %s53, %s67
      %p69 = scmp.eq.s32.totalorder %s22, 0
      %p70 = por %p68, %p69
      %s72 = sadd.s32 %s71, 1
      %p75 = scmp.eq.s32.totalorder %s16, 1
      %p76 = scmp.ne.s32.totalorder %s71, %s73
      %p77 = scmp.eq.s32.totalorder %s16, 0
      %p78 = por %p76, %p77
      %p79 = scmp.ne.s32.totalorder %s71, %s73
      %p80 = scmp.eq.s32.totalorder %s21, 1
      %p81 = por %p79, %p80
      %p82 = scmp.ne.s32.totalorder %s73, %s74
      %p83 = scmp.eq.s32.totalorder %s21, 0
      %p84 = por %p82, %p83
      %p85 = scmp.ne.s32.totalorder %s73, %s74
      %p86 = scmp.eq.s32.totalorder %s22, 1
      %p87 = por %p85, %p86
      %p89 = scmp.ne.s32.totalorder %s74, %s88
      %p90 = scmp.eq.s32.totalorder %s22, 0
      %p91 = por %p89, %p90
      %s92 = ssub.s32 %s16, %s23
      %p93 = scmp.eq.s32.totalorder %s92, 0
      %s95 = sadd.s32 %s94, 1
      %s96 = scalar_select %p93, %s94, %s95
      %p99 = pneg %p93
      %p100 = scmp.eq.s32.totalorder %s16, 1
      %p101 = por %p99, %p100
      %p102 = scmp.ne.s32.totalorder %s94, %s97
      %p103 = scmp.eq.s32.totalorder %s16, 0
      %p104 = por %p102, %p103
      %p105 = scmp.ne.s32.totalorder %s94, %s97
      %p106 = scmp.eq.s32.totalorder %s21, 1
      %p107 = por %p105, %p106
      %p108 = scmp.ne.s32.totalorder %s97, %s98
      %p109 = scmp.eq.s32.totalorder %s21, 0
      %p110 = por %p108, %p109
      %p111 = scmp.ne.s32.totalorder %s97, %s98
      %p112 = scmp.eq.s32.totalorder %s22, 1
      %p113 = por %p111, %p112
      %p115 = scmp.ne.s32.totalorder %s98, %s114
      %p116 = scmp.eq.s32.totalorder %s22, 0
      %p117 = por %p115, %p116
      %p118 = scmp.le.s32.totalorder 1, %s16
      %p119 = scmp.lt.s32.totalorder %s16, 3
      %p120 = pnand %p118, %p119
      %p121 = pneg %p120
      // Predicated region
      $region9: #{tpu_custom_call.1} parent=5 // pred_check
        _
      $region10: #{tpu_custom_call.1} parent=5 // pred_check_branch
        %123 = sbr.rel (%p120) target = $region12
      $region11: #{tpu_custom_call.1} parent=5 // pred_region
        %s124 = ssub.s32 %s16, 1
        // Predicated region
        $region13: #{tpu_custom_call.1} parent=11 // pred_check
          %p125 = pneg %p63
        $region14: #{tpu_custom_call.1} parent=11 // pred_check_branch
          %127 = sbr.rel (%p125) target = $region16
        $region15: #{tpu_custom_call.1} parent=11 // pred_region
          _
        $region16: #{tpu_custom_call.1} parent=11 // pred_fallthru
          _
        // Predicated region
        $region17: #{tpu_custom_call.1} parent=11 // pred_check
          %p128 = pneg %p84
        $region18: #{tpu_custom_call.1} parent=11 // pred_check_branch
          %130 = sbr.rel (%p128) target = $region20
        $region19: #{tpu_custom_call.1} parent=11 // pred_region
          _
        $region20: #{tpu_custom_call.1} parent=11 // pred_fallthru
          _
      $region12: #{tpu_custom_call.1} parent=5 // pred_fallthru
        _
      %p131 = scmp.lt.s32.totalorder %s16, 2
      // Predicated region
      $region21: #{tpu_custom_call.1} parent=5 // pred_check
        %p132 = pneg %p131
      $region22: #{tpu_custom_call.1} parent=5 // pred_check_branch
        %134 = sbr.rel (%p132) target = $region24
      $region23: #{tpu_custom_call.1} parent=5 // pred_region
        // Predicated region
        $region25: #{tpu_custom_call.1} parent=23 // pred_check
          %p135 = pneg %p36
        $region26: #{tpu_custom_call.1} parent=23 // pred_check_branch
          %137 = sbr.rel (%p135) target = $region28
        $region27: #{tpu_custom_call.1} parent=23 // pred_region
          %s138 = sand.u32 %s26, 1
          %s139 = scalar_lea.sflag [#allocation4], %s138
          %s140 = sand.u32 %s26, 1
          %s141 = smul.addr %s140, 1024
          %s142 = scalar_lea.vmem [#allocation3], %s141
          %s143 = smul.u32 128, %s16
          %s144 = ssub.s32 250, %s143
          %p145 = scmp.lt.s32.totalorder %s144, 128
          %s146 = scalar_select %p145, %s144, 128
          %s147 = smul.u32 128, %s146
          %s149 = ssub.s32 16384, %s147
          %150 = vsyncadd %s139, %s149
          %p151 = scmp.ne.s32.totalorder 0, %s147
          %s152 = smul.addr %s143, 128
          %s153 = scalar_lea.hbm %s0, %s152
          %s154 = smul.u32 8, %s146
          %s155 = sshll.u32 %s142, 4
          %s156 = int_to_ptr.vmem [resolvable:$true] %s155
          %s157 = sshll.u32 %s154, 4
          %161 = dma.hbm_to_vmem [thread:$0]  (%p151), %s153, %s157, %s156, %s139, 128, 128, 8
        $region28: #{tpu_custom_call.1} parent=23 // pred_fallthru
          _
      $region24: #{tpu_custom_call.1} parent=5 // pred_fallthru
        _
      %p162 = scmp.le.s32.totalorder 1, %s16
      %p163 = scmp.lt.s32.totalorder %s16, 3
      %p164 = pnand %p162, %p163
      %p165 = pneg %p164
      // Predicated region
      $region29: #{tpu_custom_call.1} parent=5 // pred_check
        _
      $region30: #{tpu_custom_call.1} parent=5 // pred_check_branch
        %167 = sbr.rel (%p164) target = $region32
      $region31: #{tpu_custom_call.1} parent=5 // pred_region
        %s168 = ssub.s32 %s16, 1
        %s169 = sand.u32 %s29, 1
        %s170 = scalar_lea.sflag [#allocation4], %s169
        %s171 = sand.u32 %s29, 1
        %s172 = smul.addr %s171, 1024
        %s173 = scalar_lea.vmem [#allocation3], %s172
        // Predicated region
        $region33: #{tpu_custom_call.1} parent=31 // pred_check
          %p174 = pneg %p42
        $region34: #{tpu_custom_call.1} parent=31 // pred_check_branch
          %176 = sbr.rel (%p174) target = $region36
        $region35: #{tpu_custom_call.1} parent=31 // pred_region
          %177 = dma.done %s170, 16384
        $region36: #{tpu_custom_call.1} parent=31 // pred_fallthru
          _
        %s178 = sand.u32 %s29, 1
        %s179 = scalar_lea.sflag [#allocation4], %s178
        %s180 = sand.u32 %s29, 1
        %s181 = smul.addr %s180, 1024
        %s182 = scalar_lea.vmem [#allocation3], %s181
        %p183 = pneg %p42
        %p184 = pneg %p39
        %p185 = pneg %p63
        %p186 = pneg %p60
        %p187 = pneg %p84
        %p188 = pneg %p81
        %p189 = pneg %p110
        %p190 = pneg %p107
        %s191 = sand.u32 %s97, 1
        %s192 = scalar_lea.sflag [#allocation5], %s191
        %s193 = sand.u32 %s97, 1
        %s194 = smul.addr %s193, 8
        %s195 = scalar_lea.vmem [#allocation6], %s194
        %s196 = smul.u32 128, %s21
        %s197 = ssub.s32 250, %s196
        %p198 = scmp.lt.s32.totalorder %s197, 128
        %s199 = scalar_select %p198, %s197, 128
        %s200 = smul.u32 128, %s199
        %s201 = smul.u32 8, %s21
        %v202 = vld [vmem:[%s173] sm:$0xff]
        %v203 = vld [vmem:[%s173 + $0x8] sm:$0xff]
        %v204 = vld [vmem:[%s173 + $0x10] sm:$0xff]
        %v205 = vld [vmem:[%s173 + $0x18] sm:$0xff]
        %v206 = vld [vmem:[%s173 + $0x20] sm:$0xff]
        %v207 = vld [vmem:[%s173 + $0x28] sm:$0xff]
        %v208 = vld [vmem:[%s173 + $0x30] sm:$0xff]
        %v209 = vld [vmem:[%s173 + $0x38] sm:$0xff]
        %v210 = vld [vmem:[%s173 + $0x40] sm:$0xff]
        %v211 = vld [vmem:[%s173 + $0x48] sm:$0xff]
        %v212 = vld [vmem:[%s173 + $0x50] sm:$0xff]
        %v213 = vld [vmem:[%s173 + $0x58] sm:$0xff]
        %v214 = vld [vmem:[%s173 + $0x60] sm:$0xff]
        %v215 = vld [vmem:[%s173 + $0x68] sm:$0xff]
        %v216 = vld [vmem:[%s173 + $0x70] sm:$0xff]
        %v217 = vld [vmem:[%s173 + $0x78] sm:$0xff]
        %v218 = vld [vmem:[%s173 + $0x80] sm:$0xff]
        %v219 = vld [vmem:[%s173 + $0x88] sm:$0xff]
        %v220 = vld [vmem:[%s173 + $0x90] sm:$0xff]
        %v221 = vld [vmem:[%s173 + $0x98] sm:$0xff]
        %v222 = vld [vmem:[%s173 + $0xa0] sm:$0xff]
        %v223 = vld [vmem:[%s173 + $0xa8] sm:$0xff]
        %v224 = vld [vmem:[%s173 + $0xb0] sm:$0xff]
        %v225 = vld [vmem:[%s173 + $0xb8] sm:$0xff]
        %v226 = vld [vmem:[%s173 + $0xc0] sm:$0xff]
        %v227 = vld [vmem:[%s173 + $0xc8] sm:$0xff]
        %v228 = vld [vmem:[%s173 + $0xd0] sm:$0xff]
        %v229 = vld [vmem:[%s173 + $0xd8] sm:$0xff]
        %v230 = vld [vmem:[%s173 + $0xe0] sm:$0xff]
        %v231 = vld [vmem:[%s173 + $0xe8] sm:$0xff]
        %v232 = vld [vmem:[%s173 + $0xf0] sm:$0xff]
        %v233 = vld [vmem:[%s173 + $0xf8] sm:$0xff]
        %v234 = vld [vmem:[%s173 + $0x100] sm:$0xff]
        %v235 = vld [vmem:[%s173 + $0x108] sm:$0xff]
        %v236 = vld [vmem:[%s173 + $0x110] sm:$0xff]
        %v237 = vld [vmem:[%s173 + $0x118] sm:$0xff]
        %v238 = vld [vmem:[%s173 + $0x120] sm:$0xff]
        %v239 = vld [vmem:[%s173 + $0x128] sm:$0xff]
        %v240 = vld [vmem:[%s173 + $0x130] sm:$0xff]
        %v241 = vld [vmem:[%s173 + $0x138] sm:$0xff]
        %v242 = vld [vmem:[%s173 + $0x140] sm:$0xff]
        %v243 = vld [vmem:[%s173 + $0x148] sm:$0xff]
        %v244 = vld [vmem:[%s173 + $0x150] sm:$0xff]
        %v245 = vld [vmem:[%s173 + $0x158] sm:$0xff]
        %v246 = vld [vmem:[%s173 + $0x160] sm:$0xff]
        %v247 = vld [vmem:[%s173 + $0x168] sm:$0xff]
        %v248 = vld [vmem:[%s173 + $0x170] sm:$0xff]
        %v249 = vld [vmem:[%s173 + $0x178] sm:$0xff]
        %v250 = vld [vmem:[%s173 + $0x180] sm:$0xff]
        %v251 = vld [vmem:[%s173 + $0x188] sm:$0xff]
        %v252 = vld [vmem:[%s173 + $0x190] sm:$0xff]
        %v253 = vld [vmem:[%s173 + $0x198] sm:$0xff]
        %v254 = vld [vmem:[%s173 + $0x1a0] sm:$0xff]
        %v255 = vld [vmem:[%s173 + $0x1a8] sm:$0xff]
        %v256 = vld [vmem:[%s173 + $0x1b0] sm:$0xff]
        %v257 = vld [vmem:[%s173 + $0x1b8] sm:$0xff]
        %v258 = vld [vmem:[%s173 + $0x1c0] sm:$0xff]
        %v259 = vld [vmem:[%s173 + $0x1c8] sm:$0xff]
        %v260 = vld [vmem:[%s173 + $0x1d0] sm:$0xff]
        %v261 = vld [vmem:[%s173 + $0x1d8] sm:$0xff]
        %v262 = vld [vmem:[%s173 + $0x1e0] sm:$0xff]
        %v263 = vld [vmem:[%s173 + $0x1e8] sm:$0xff]
        %v264 = vld [vmem:[%s173 + $0x1f0] sm:$0xff]
        %v265 = vld [vmem:[%s173 + $0x1f8] sm:$0xff]
        %v266 = vld [vmem:[%s173 + $0x200] sm:$0xff]
        %v267 = vld [vmem:[%s173 + $0x208] sm:$0xff]
        %v268 = vld [vmem:[%s173 + $0x210] sm:$0xff]
        %v269 = vld [vmem:[%s173 + $0x218] sm:$0xff]
        %v270 = vld [vmem:[%s173 + $0x220] sm:$0xff]
        %v271 = vld [vmem:[%s173 + $0x228] sm:$0xff]
        %v272 = vld [vmem:[%s173 + $0x230] sm:$0xff]
        %v273 = vld [vmem:[%s173 + $0x238] sm:$0xff]
        %v274 = vld [vmem:[%s173 + $0x240] sm:$0xff]
        %v275 = vld [vmem:[%s173 + $0x248] sm:$0xff]
        %v276 = vld [vmem:[%s173 + $0x250] sm:$0xff]
        %v277 = vld [vmem:[%s173 + $0x258] sm:$0xff]
        %v278 = vld [vmem:[%s173 + $0x260] sm:$0xff]
        %v279 = vld [vmem:[%s173 + $0x268] sm:$0xff]
        %v280 = vld [vmem:[%s173 + $0x270] sm:$0xff]
        %v281 = vld [vmem:[%s173 + $0x278] sm:$0xff]
        %v282 = vld [vmem:[%s173 + $0x280] sm:$0xff]
        %v283 = vld [vmem:[%s173 + $0x288] sm:$0xff]
        %v284 = vld [vmem:[%s173 + $0x290] sm:$0xff]
        %v285 = vld [vmem:[%s173 + $0x298] sm:$0xff]
        %v286 = vld [vmem:[%s173 + $0x2a0] sm:$0xff]
        %v287 = vld [vmem:[%s173 + $0x2a8] sm:$0xff]
        %v288 = vld [vmem:[%s173 + $0x2b0] sm:$0xff]
        %v289 = vld [vmem:[%s173 + $0x2b8] sm:$0xff]
        %v290 = vld [vmem:[%s173 + $0x2c0] sm:$0xff]
        %v291 = vld [vmem:[%s173 + $0x2c8] sm:$0xff]
        %v292 = vld [vmem:[%s173 + $0x2d0] sm:$0xff]
        %v293 = vld [vmem:[%s173 + $0x2d8] sm:$0xff]
        %v294 = vld [vmem:[%s173 + $0x2e0] sm:$0xff]
        %v295 = vld [vmem:[%s173 + $0x2e8] sm:$0xff]
        %v296 = vld [vmem:[%s173 + $0x2f0] sm:$0xff]
        %v297 = vld [vmem:[%s173 + $0x2f8] sm:$0xff]
        %v298 = vld [vmem:[%s173 + $0x300] sm:$0xff]
        %v299 = vld [vmem:[%s173 + $0x308] sm:$0xff]
        %v300 = vld [vmem:[%s173 + $0x310] sm:$0xff]
        %v301 = vld [vmem:[%s173 + $0x318] sm:$0xff]
        %v302 = vld [vmem:[%s173 + $0x320] sm:$0xff]
        %v303 = vld [vmem:[%s173 + $0x328] sm:$0xff]
        %v304 = vld [vmem:[%s173 + $0x330] sm:$0xff]
        %v305 = vld [vmem:[%s173 + $0x338] sm:$0xff]
        %v306 = vld [vmem:[%s173 + $0x340] sm:$0xff]
        %v307 = vld [vmem:[%s173 + $0x348] sm:$0xff]
        %v308 = vld [vmem:[%s173 + $0x350] sm:$0xff]
        %v309 = vld [vmem:[%s173 + $0x358] sm:$0xff]
        %v310 = vld [vmem:[%s173 + $0x360] sm:$0xff]
        %v311 = vld [vmem:[%s173 + $0x368] sm:$0xff]
        %v312 = vld [vmem:[%s173 + $0x370] sm:$0xff]
        %v313 = vld [vmem:[%s173 + $0x378] sm:$0xff]
        %v314 = vld [vmem:[%s173 + $0x380] sm:$0xff]
        %v315 = vld [vmem:[%s173 + $0x388] sm:$0xff]
        %v316 = vld [vmem:[%s173 + $0x390] sm:$0xff]
        %v317 = vld [vmem:[%s173 + $0x398] sm:$0xff]
        %v318 = vld [vmem:[%s173 + $0x3a0] sm:$0xff]
        %v319 = vld [vmem:[%s173 + $0x3a8] sm:$0xff]
        %v320 = vld [vmem:[%s173 + $0x3b0] sm:$0xff]
        %v321 = vld [vmem:[%s173 + $0x3b8] sm:$0xff]
        %v322 = vld [vmem:[%s173 + $0x3c0] sm:$0xff]
        %v323 = vld [vmem:[%s173 + $0x3c8] sm:$0xff]
        %v324 = vld [vmem:[%s173 + $0x3d0] sm:$0xff]
        %v325 = vld [vmem:[%s173 + $0x3d8] sm:$0xff]
        %v326 = vld [vmem:[%s173 + $0x3e0] sm:$0xff]
        %v327 = vld [vmem:[%s173 + $0x3e8] sm:$0xff]
        %v328 = vld [vmem:[%s173 + $0x3f0] sm:$0xff]
        %v329 = vld [vmem:[%s173 + $0x3f8] sm:$0xff]
        %v330 = vld [vmem:[%s1] sm:$0xff]
        %v331 = vld [vmem:[%s1 + $0x8] sm:$0xff]
        %v332 = vld [vmem:[%s1 + $0x10] sm:$0xff]
        %v333 = vld [vmem:[%s1 + $0x18] sm:$0xff]
        %v334 = vld [vmem:[%s1 + $0x20] sm:$0xff]
        %v335 = vld [vmem:[%s1 + $0x28] sm:$0xff]
        %v336 = vld [vmem:[%s1 + $0x30] sm:$0xff]
        %v337 = vld [vmem:[%s1 + $0x38] sm:$0xff]
        %v338 = vld [vmem:[%s1 + $0x40] sm:$0xff]
        %v339 = vld [vmem:[%s1 + $0x48] sm:$0xff]
        %v340 = vld [vmem:[%s1 + $0x50] sm:$0xff]
        %v341 = vld [vmem:[%s1 + $0x58] sm:$0xff]
        %v342 = vld [vmem:[%s1 + $0x60] sm:$0xff]
        %v343 = vld [vmem:[%s1 + $0x68] sm:$0xff]
        %v344 = vld [vmem:[%s1 + $0x70] sm:$0xff]
        %v345 = vld [vmem:[%s1 + $0x78] sm:$0xff]
        %s346 = sld [smem:[#allocation2]]
        %347 = vxpose.xlu0.b32.start [1/16] %v202, 128
        %348 = vxpose.xlu0.b32.cont [2/16] %v203, 128
        %349 = vxpose.xlu0.b32.cont [3/16] %v204, 128
        %350 = vxpose.xlu0.b32.cont [4/16] %v205, 128
        %351 = vxpose.xlu0.b32.cont [5/16] %v206, 128
        %352 = vxpose.xlu0.b32.cont [6/16] %v207, 128
        %353 = vxpose.xlu0.b32.cont [7/16] %v208, 128
        %354 = vxpose.xlu0.b32.cont [8/16] %v209, 128
        %355 = vxpose.xlu0.b32.cont [9/16] %v210, 128
        %356 = vxpose.xlu0.b32.cont [10/16] %v211, 128
        %357 = vxpose.xlu0.b32.cont [11/16] %v212, 128
        %358 = vxpose.xlu0.b32.cont [12/16] %v213, 128
        %359 = vxpose.xlu0.b32.cont [13/16] %v214, 128
        %360 = vxpose.xlu0.b32.cont [14/16] %v215, 128
        %361 = vxpose.xlu0.b32.cont [15/16] %v216, 128
        %362 = vxpose.xlu0.b32.end [16/16] %v217, 128
        %v363 = vpop.trf.xlu0
        %v364 = vpop.trf.xlu0
        %v365 = vpop.trf.xlu0
        %v366 = vpop.trf.xlu0
        %v367 = vpop.trf.xlu0
        %v368 = vpop.trf.xlu0
        %v369 = vpop.trf.xlu0
        %v370 = vpop.trf.xlu0
        %v371 = vpop.trf.xlu0
        %v372 = vpop.trf.xlu0
        %v373 = vpop.trf.xlu0
        %v374 = vpop.trf.xlu0
        %v375 = vpop.trf.xlu0
        %v376 = vpop.trf.xlu0
        %v377 = vpop.trf.xlu0
        %v378 = vpop.trf.xlu0
        %379 = vxpose.xlu0.b32.start [1/16] %v218, 128
        %380 = vxpose.xlu0.b32.cont [2/16] %v219, 128
        %381 = vxpose.xlu0.b32.cont [3/16] %v220, 128
        %382 = vxpose.xlu0.b32.cont [4/16] %v221, 128
        %383 = vxpose.xlu0.b32.cont [5/16] %v222, 128
        %384 = vxpose.xlu0.b32.cont [6/16] %v223, 128
        %385 = vxpose.xlu0.b32.cont [7/16] %v224, 128
        %386 = vxpose.xlu0.b32.cont [8/16] %v225, 128
        %387 = vxpose.xlu0.b32.cont [9/16] %v226, 128
        %388 = vxpose.xlu0.b32.cont [10/16] %v227, 128
        %389 = vxpose.xlu0.b32.cont [11/16] %v228, 128
        %390 = vxpose.xlu0.b32.cont [12/16] %v229, 128
        %391 = vxpose.xlu0.b32.cont [13/16] %v230, 128
        %392 = vxpose.xlu0.b32.cont [14/16] %v231, 128
        %393 = vxpose.xlu0.b32.cont [15/16] %v232, 128
        %394 = vxpose.xlu0.b32.end [16/16] %v233, 128
        %v395 = vpop.trf.xlu0
        %v396 = vpop.trf.xlu0
        %v397 = vpop.trf.xlu0
        %v398 = vpop.trf.xlu0
        %v399 = vpop.trf.xlu0
        %v400 = vpop.trf.xlu0
        %v401 = vpop.trf.xlu0
        %v402 = vpop.trf.xlu0
        %v403 = vpop.trf.xlu0
        %v404 = vpop.trf.xlu0
        %v405 = vpop.trf.xlu0
        %v406 = vpop.trf.xlu0
        %v407 = vpop.trf.xlu0
        %v408 = vpop.trf.xlu0
        %v409 = vpop.trf.xlu0
        %v410 = vpop.trf.xlu0
        %411 = vxpose.xlu0.b32.start [1/16] %v234, 128
        %412 = vxpose.xlu0.b32.cont [2/16] %v235, 128
        %413 = vxpose.xlu0.b32.cont [3/16] %v236, 128
        %414 = vxpose.xlu0.b32.cont [4/16] %v237, 128
        %415 = vxpose.xlu0.b32.cont [5/16] %v238, 128
        %416 = vxpose.xlu0.b32.cont [6/16] %v239, 128
        %417 = vxpose.xlu0.b32.cont [7/16] %v240, 128
        %418 = vxpose.xlu0.b32.cont [8/16] %v241, 128
        %419 = vxpose.xlu0.b32.cont [9/16] %v242, 128
        %420 = vxpose.xlu0.b32.cont [10/16] %v243, 128
        %421 = vxpose.xlu0.b32.cont [11/16] %v244, 128
        %422 = vxpose.xlu0.b32.cont [12/16] %v245, 128
        %423 = vxpose.xlu0.b32.cont [13/16] %v246, 128
        %424 = vxpose.xlu0.b32.cont [14/16] %v247, 128
        %425 = vxpose.xlu0.b32.cont [15/16] %v248, 128
        %426 = vxpose.xlu0.b32.end [16/16] %v249, 128
        %v427 = vpop.trf.xlu0
        %v428 = vpop.trf.xlu0
        %v429 = vpop.trf.xlu0
        %v430 = vpop.trf.xlu0
        %v431 = vpop.trf.xlu0
        %v432 = vpop.trf.xlu0
        %v433 = vpop.trf.xlu0
        %v434 = vpop.trf.xlu0
        %v435 = vpop.trf.xlu0
        %v436 = vpop.trf.xlu0
        %v437 = vpop.trf.xlu0
        %v438 = vpop.trf.xlu0
        %v439 = vpop.trf.xlu0
        %v440 = vpop.trf.xlu0
        %v441 = vpop.trf.xlu0
        %v442 = vpop.trf.xlu0
        %443 = vxpose.xlu0.b32.start [1/16] %v250, 128
        %444 = vxpose.xlu0.b32.cont [2/16] %v251, 128
        %445 = vxpose.xlu0.b32.cont [3/16] %v252, 128
        %446 = vxpose.xlu0.b32.cont [4/16] %v253, 128
        %447 = vxpose.xlu0.b32.cont [5/16] %v254, 128
        %448 = vxpose.xlu0.b32.cont [6/16] %v255, 128
        %449 = vxpose.xlu0.b32.cont [7/16] %v256, 128
        %450 = vxpose.xlu0.b32.cont [8/16] %v257, 128
        %451 = vxpose.xlu0.b32.cont [9/16] %v258, 128
        %452 = vxpose.xlu0.b32.cont [10/16] %v259, 128
        %453 = vxpose.xlu0.b32.cont [11/16] %v260, 128
        %454 = vxpose.xlu0.b32.cont [12/16] %v261, 128
        %455 = vxpose.xlu0.b32.cont [13/16] %v262, 128
        %456 = vxpose.xlu0.b32.cont [14/16] %v263, 128
        %457 = vxpose.xlu0.b32.cont [15/16] %v264, 128
        %458 = vxpose.xlu0.b32.end [16/16] %v265, 128
        %v459 = vpop.trf.xlu0
        %v460 = vpop.trf.xlu0
        %v461 = vpop.trf.xlu0
        %v462 = vpop.trf.xlu0
        %v463 = vpop.trf.xlu0
        %v464 = vpop.trf.xlu0
        %v465 = vpop.trf.xlu0
        %v466 = vpop.trf.xlu0
        %v467 = vpop.trf.xlu0
        %v468 = vpop.trf.xlu0
        %v469 = vpop.trf.xlu0
        %v470 = vpop.trf.xlu0
        %v471 = vpop.trf.xlu0
        %v472 = vpop.trf.xlu0
        %v473 = vpop.trf.xlu0
        %v474 = vpop.trf.xlu0
        %475 = vxpose.xlu0.b32.start [1/16] %v266, 128
        %476 = vxpose.xlu0.b32.cont [2/16] %v267, 128
        %477 = vxpose.xlu0.b32.cont [3/16] %v268, 128
        %478 = vxpose.xlu0.b32.cont [4/16] %v269, 128
        %479 = vxpose.xlu0.b32.cont [5/16] %v270, 128
        %480 = vxpose.xlu0.b32.cont [6/16] %v271, 128
        %481 = vxpose.xlu0.b32.cont [7/16] %v272, 128
        %482 = vxpose.xlu0.b32.cont [8/16] %v273, 128
        %483 = vxpose.xlu0.b32.cont [9/16] %v274, 128
        %484 = vxpose.xlu0.b32.cont [10/16] %v275, 128
        %485 = vxpose.xlu0.b32.cont [11/16] %v276, 128
        %486 = vxpose.xlu0.b32.cont [12/16] %v277, 128
        %487 = vxpose.xlu0.b32.cont [13/16] %v278, 128
        %488 = vxpose.xlu0.b32.cont [14/16] %v279, 128
        %489 = vxpose.xlu0.b32.cont [15/16] %v280, 128
        %490 = vxpose.xlu0.b32.end [16/16] %v281, 128
        %v491 = vpop.trf.xlu0
        %v492 = vpop.trf.xlu0
        %v493 = vpop.trf.xlu0
        %v494 = vpop.trf.xlu0
        %v495 = vpop.trf.xlu0
        %v496 = vpop.trf.xlu0
        %v497 = vpop.trf.xlu0
        %v498 = vpop.trf.xlu0
        %v499 = vpop.trf.xlu0
        %v500 = vpop.trf.xlu0
        %v501 = vpop.trf.xlu0
        %v502 = vpop.trf.xlu0
        %v503 = vpop.trf.xlu0
        %v504 = vpop.trf.xlu0
        %v505 = vpop.trf.xlu0
        %v506 = vpop.trf.xlu0
        %507 = vxpose.xlu0.b32.start [1/16] %v282, 128
        %508 = vxpose.xlu0.b32.cont [2/16] %v283, 128
        %509 = vxpose.xlu0.b32.cont [3/16] %v284, 128
        %510 = vxpose.xlu0.b32.cont [4/16] %v285, 128
        %511 = vxpose.xlu0.b32.cont [5/16] %v286, 128
        %512 = vxpose.xlu0.b32.cont [6/16] %v287, 128
        %513 = vxpose.xlu0.b32.cont [7/16] %v288, 128
        %514 = vxpose.xlu0.b32.cont [8/16] %v289, 128
        %515 = vxpose.xlu0.b32.cont [9/16] %v290, 128
        %516 = vxpose.xlu0.b32.cont [10/16] %v291, 128
        %517 = vxpose.xlu0.b32.cont [11/16] %v292, 128
        %518 = vxpose.xlu0.b32.cont [12/16] %v293, 128
        %519 = vxpose.xlu0.b32.cont [13/16] %v294, 128
        %520 = vxpose.xlu0.b32.cont [14/16] %v295, 128
        %521 = vxpose.xlu0.b32.cont [15/16] %v296, 128
        %522 = vxpose.xlu0.b32.end [16/16] %v297, 128
        %v523 = vpop.trf.xlu0
        %v524 = vpop.trf.xlu0
        %v525 = vpop.trf.xlu0
        %v526 = vpop.trf.xlu0
        %v527 = vpop.trf.xlu0
        %v528 = vpop.trf.xlu0
        %v529 = vpop.trf.xlu0
        %v530 = vpop.trf.xlu0
        %v531 = vpop.trf.xlu0
        %v532 = vpop.trf.xlu0
        %v533 = vpop.trf.xlu0
        %v534 = vpop.trf.xlu0
        %v535 = vpop.trf.xlu0
        %v536 = vpop.trf.xlu0
        %v537 = vpop.trf.xlu0
        %v538 = vpop.trf.xlu0
        %539 = vxpose.xlu0.b32.start [1/16] %v298, 128
        %540 = vxpose.xlu0.b32.cont [2/16] %v299, 128
        %541 = vxpose.xlu0.b32.cont [3/16] %v300, 128
        %542 = vxpose.xlu0.b32.cont [4/16] %v301, 128
        %543 = vxpose.xlu0.b32.cont [5/16] %v302, 128
        %544 = vxpose.xlu0.b32.cont [6/16] %v303, 128
        %545 = vxpose.xlu0.b32.cont [7/16] %v304, 128
        %546 = vxpose.xlu0.b32.cont [8/16] %v305, 128
        %547 = vxpose.xlu0.b32.cont [9/16] %v306, 128
        %548 = vxpose.xlu0.b32.cont [10/16] %v307, 128
        %549 = vxpose.xlu0.b32.cont [11/16] %v308, 128
        %550 = vxpose.xlu0.b32.cont [12/16] %v309, 128
        %551 = vxpose.xlu0.b32.cont [13/16] %v310, 128
        %552 = vxpose.xlu0.b32.cont [14/16] %v311, 128
        %553 = vxpose.xlu0.b32.cont [15/16] %v312, 128
        %554 = vxpose.xlu0.b32.end [16/16] %v313, 128
        %v555 = vpop.trf.xlu0
        %v556 = vpop.trf.xlu0
        %v557 = vpop.trf.xlu0
        %v558 = vpop.trf.xlu0
        %v559 = vpop.trf.xlu0
        %v560 = vpop.trf.xlu0
        %v561 = vpop.trf.xlu0
        %v562 = vpop.trf.xlu0
        %v563 = vpop.trf.xlu0
        %v564 = vpop.trf.xlu0
        %v565 = vpop.trf.xlu0
        %v566 = vpop.trf.xlu0
        %v567 = vpop.trf.xlu0
        %v568 = vpop.trf.xlu0
        %v569 = vpop.trf.xlu0
        %v570 = vpop.trf.xlu0
        %571 = vxpose.xlu0.b32.start [1/16] %v314, 128
        %572 = vxpose.xlu0.b32.cont [2/16] %v315, 128
        %573 = vxpose.xlu0.b32.cont [3/16] %v316, 128
        %574 = vxpose.xlu0.b32.cont [4/16] %v317, 128
        %575 = vxpose.xlu0.b32.cont [5/16] %v318, 128
        %576 = vxpose.xlu0.b32.cont [6/16] %v319, 128
        %577 = vxpose.xlu0.b32.cont [7/16] %v320, 128
        %578 = vxpose.xlu0.b32.cont [8/16] %v321, 128
        %579 = vxpose.xlu0.b32.cont [9/16] %v322, 128
        %580 = vxpose.xlu0.b32.cont [10/16] %v323, 128
        %581 = vxpose.xlu0.b32.cont [11/16] %v324, 128
        %582 = vxpose.xlu0.b32.cont [12/16] %v325, 128
        %583 = vxpose.xlu0.b32.cont [13/16] %v326, 128
        %584 = vxpose.xlu0.b32.cont [14/16] %v327, 128
        %585 = vxpose.xlu0.b32.cont [15/16] %v328, 128
        %586 = vxpose.xlu0.b32.end [16/16] %v329, 128
        %v587 = vpop.trf.xlu0
        %v588 = vpop.trf.xlu0
        %v589 = vpop.trf.xlu0
        %v590 = vpop.trf.xlu0
        %v591 = vpop.trf.xlu0
        %v592 = vpop.trf.xlu0
        %v593 = vpop.trf.xlu0
        %v594 = vpop.trf.xlu0
        %v595 = vpop.trf.xlu0
        %v596 = vpop.trf.xlu0
        %v597 = vpop.trf.xlu0
        %v598 = vpop.trf.xlu0
        %v599 = vpop.trf.xlu0
        %v600 = vpop.trf.xlu0
        %v601 = vpop.trf.xlu0
        %v602 = vpop.trf.xlu0
        %604 = vset.pattern.permute.xlu0 0
        %605 = vperm.xlu0 %604, %v330
        %v606 = vpop.permute.xlu0 %605
        %609 = vset.pattern.permute.xlu0 0
        %610 = vperm.xlu0 %609, %v331
        %v611 = vpop.permute.xlu0 %610
        %614 = vset.pattern.permute.xlu0 0
        %615 = vperm.xlu0 %614, %v332
        %v616 = vpop.permute.xlu0 %615
        %619 = vset.pattern.permute.xlu0 0
        %620 = vperm.xlu0 %619, %v333
        %v621 = vpop.permute.xlu0 %620
        %624 = vset.pattern.permute.xlu0 0
        %625 = vperm.xlu0 %624, %v334
        %v626 = vpop.permute.xlu0 %625
        %629 = vset.pattern.permute.xlu0 0
        %630 = vperm.xlu0 %629, %v335
        %v631 = vpop.permute.xlu0 %630
        %634 = vset.pattern.permute.xlu0 0
        %635 = vperm.xlu0 %634, %v336
        %v636 = vpop.permute.xlu0 %635
        %639 = vset.pattern.permute.xlu0 0
        %640 = vperm.xlu0 %639, %v337
        %v641 = vpop.permute.xlu0 %640
        %644 = vset.pattern.permute.xlu0 0
        %645 = vperm.xlu0 %644, %v338
        %v646 = vpop.permute.xlu0 %645
        %649 = vset.pattern.permute.xlu0 0
        %650 = vperm.xlu0 %649, %v339
        %v651 = vpop.permute.xlu0 %650
        %654 = vset.pattern.permute.xlu0 0
        %655 = vperm.xlu0 %654, %v340
        %v656 = vpop.permute.xlu0 %655
        %659 = vset.pattern.permute.xlu0 0
        %660 = vperm.xlu0 %659, %v341
        %v661 = vpop.permute.xlu0 %660
        %664 = vset.pattern.permute.xlu0 0
        %665 = vperm.xlu0 %664, %v342
        %v666 = vpop.permute.xlu0 %665
        %669 = vset.pattern.permute.xlu0 0
        %670 = vperm.xlu0 %669, %v343
        %v671 = vpop.permute.xlu0 %670
        %674 = vset.pattern.permute.xlu0 0
        %675 = vperm.xlu0 %674, %v344
        %v676 = vpop.permute.xlu0 %675
        %679 = vset.pattern.permute.xlu0 0
        %680 = vperm.xlu0 %679, %v345
        %v681 = vpop.permute.xlu0 %680
        %v683 = vmul.f32 %v363, %v606
        %v684 = vmul.f32 %v395, %v606
        %v685 = vmul.f32 %v427, %v606
        %v686 = vmul.f32 %v459, %v606
        %v687 = vmul.f32 %v491, %v606
        %v688 = vmul.f32 %v523, %v606
        %v689 = vmul.f32 %v555, %v606
        %v690 = vmul.f32 %v587, %v606
        %v691 = vmul.f32 %v364, %v611
        %v692 = vmul.f32 %v396, %v611
        %v693 = vmul.f32 %v428, %v611
        %v694 = vmul.f32 %v460, %v611
        %v695 = vmul.f32 %v492, %v611
        %v696 = vmul.f32 %v524, %v611
        %v697 = vmul.f32 %v556, %v611
        %v698 = vmul.f32 %v588, %v611
        %v699 = vmul.f32 %v365, %v616
        %v700 = vmul.f32 %v397, %v616
        %v701 = vmul.f32 %v429, %v616
        %v702 = vmul.f32 %v461, %v616
        %v703 = vmul.f32 %v493, %v616
        %v704 = vmul.f32 %v525, %v616
        %v705 = vmul.f32 %v557, %v616
        %v706 = vmul.f32 %v589, %v616
        %v707 = vmul.f32 %v366, %v621
        %v708 = vmul.f32 %v398, %v621
        %v709 = vmul.f32 %v430, %v621
        %v710 = vmul.f32 %v462, %v621
        %v711 = vmul.f32 %v494, %v621
        %v712 = vmul.f32 %v526, %v621
        %v713 = vmul.f32 %v558, %v621
        %v714 = vmul.f32 %v590, %v621
        %v715 = vmul.f32 %v367, %v626
        %v716 = vmul.f32 %v399, %v626
        %v717 = vmul.f32 %v431, %v626
        %v718 = vmul.f32 %v463, %v626
        %v719 = vmul.f32 %v495, %v626
        %v720 = vmul.f32 %v527, %v626
        %v721 = vmul.f32 %v559, %v626
        %v722 = vmul.f32 %v591, %v626
        %v723 = vmul.f32 %v368, %v631
        %v724 = vmul.f32 %v400, %v631
        %v725 = vmul.f32 %v432, %v631
        %v726 = vmul.f32 %v464, %v631
        %v727 = vmul.f32 %v496, %v631
        %v728 = vmul.f32 %v528, %v631
        %v729 = vmul.f32 %v560, %v631
        %v730 = vmul.f32 %v592, %v631
        %v731 = vmul.f32 %v369, %v636
        %v732 = vmul.f32 %v401, %v636
        %v733 = vmul.f32 %v433, %v636
        %v734 = vmul.f32 %v465, %v636
        %v735 = vmul.f32 %v497, %v636
        %v736 = vmul.f32 %v529, %v636
        %v737 = vmul.f32 %v561, %v636
        %v738 = vmul.f32 %v593, %v636
        %v739 = vmul.f32 %v370, %v641
        %v740 = vmul.f32 %v402, %v641
        %v741 = vmul.f32 %v434, %v641
        %v742 = vmul.f32 %v466, %v641
        %v743 = vmul.f32 %v498, %v641
        %v744 = vmul.f32 %v530, %v641
        %v745 = vmul.f32 %v562, %v641
        %v746 = vmul.f32 %v594, %v641
        %v747 = vmul.f32 %v371, %v646
        %v748 = vmul.f32 %v403, %v646
        %v749 = vmul.f32 %v435, %v646
        %v750 = vmul.f32 %v467, %v646
        %v751 = vmul.f32 %v499, %v646
        %v752 = vmul.f32 %v531, %v646
        %v753 = vmul.f32 %v563, %v646
        %v754 = vmul.f32 %v595, %v646
        %v755 = vmul.f32 %v372, %v651
        %v756 = vmul.f32 %v404, %v651
        %v757 = vmul.f32 %v436, %v651
        %v758 = vmul.f32 %v468, %v651
        %v759 = vmul.f32 %v500, %v651
        %v760 = vmul.f32 %v532, %v651
        %v761 = vmul.f32 %v564, %v651
        %v762 = vmul.f32 %v596, %v651
        %v763 = vmul.f32 %v373, %v656
        %v764 = vmul.f32 %v405, %v656
        %v765 = vmul.f32 %v437, %v656
        %v766 = vmul.f32 %v469, %v656
        %v767 = vmul.f32 %v501, %v656
        %v768 = vmul.f32 %v533, %v656
        %v769 = vmul.f32 %v565, %v656
        %v770 = vmul.f32 %v597, %v656
        %v771 = vmul.f32 %v374, %v661
        %v772 = vmul.f32 %v406, %v661
        %v773 = vmul.f32 %v438, %v661
        %v774 = vmul.f32 %v470, %v661
        %v775 = vmul.f32 %v502, %v661
        %v776 = vmul.f32 %v534, %v661
        %v777 = vmul.f32 %v566, %v661
        %v778 = vmul.f32 %v598, %v661
        %v779 = vmul.f32 %v375, %v666
        %v780 = vmul.f32 %v407, %v666
        %v781 = vmul.f32 %v439, %v666
        %v782 = vmul.f32 %v471, %v666
        %v783 = vmul.f32 %v503, %v666
        %v784 = vmul.f32 %v535, %v666
        %v785 = vmul.f32 %v567, %v666
        %v786 = vmul.f32 %v599, %v666
        %v787 = vmul.f32 %v376, %v671
        %v788 = vmul.f32 %v408, %v671
        %v789 = vmul.f32 %v440, %v671
        %v790 = vmul.f32 %v472, %v671
        %v791 = vmul.f32 %v504, %v671
        %v792 = vmul.f32 %v536, %v671
        %v793 = vmul.f32 %v568, %v671
        %v794 = vmul.f32 %v600, %v671
        %v795 = vmul.f32 %v377, %v676
        %v796 = vmul.f32 %v409, %v676
        %v797 = vmul.f32 %v441, %v676
        %v798 = vmul.f32 %v473, %v676
        %v799 = vmul.f32 %v505, %v676
        %v800 = vmul.f32 %v537, %v676
        %v801 = vmul.f32 %v569, %v676
        %v802 = vmul.f32 %v601, %v676
        %v803 = vmul.f32 %v378, %v681
        %v804 = vmul.f32 %v410, %v681
        %v805 = vmul.f32 %v442, %v681
        %v806 = vmul.f32 %v474, %v681
        %v807 = vmul.f32 %v506, %v681
        %v808 = vmul.f32 %v538, %v681
        %v809 = vmul.f32 %v570, %v681
        %v810 = vmul.f32 %v602, %v681
        %v811 = vadd.f32 %v683, %v691
        %v812 = vadd.f32 %v811, %v699
        %v813 = vadd.f32 %v812, %v707
        %v814 = vadd.f32 %v813, %v715
        %v815 = vadd.f32 %v814, %v723
        %v816 = vadd.f32 %v815, %v731
        %v817 = vadd.f32 %v816, %v739
        %v818 = vadd.f32 %v817, %v747
        %v819 = vadd.f32 %v818, %v755
        %v820 = vadd.f32 %v819, %v763
        %v821 = vadd.f32 %v820, %v771
        %v822 = vadd.f32 %v821, %v779
        %v823 = vadd.f32 %v822, %v787
        %v824 = vadd.f32 %v823, %v795
        %v825 = vadd.f32 %v824, %v803
        %v826 = vrot.slane %v825, 4
        %v827 = vadd.f32 %v825, %v826
        %v828 = vrot.slane %v827, 2
        %v829 = vadd.f32 %v827, %v828
        %v830 = vrot.slane %v829, 1
        %v831 = vadd.f32 %v829, %v830
        %v832 = vadd.f32 %v684, %v692
        %v833 = vadd.f32 %v832, %v700
        %v834 = vadd.f32 %v833, %v708
        %v835 = vadd.f32 %v834, %v716
        %v836 = vadd.f32 %v835, %v724
        %v837 = vadd.f32 %v836, %v732
        %v838 = vadd.f32 %v837, %v740
        %v839 = vadd.f32 %v838, %v748
        %v840 = vadd.f32 %v839, %v756
        %v841 = vadd.f32 %v840, %v764
        %v842 = vadd.f32 %v841, %v772
        %v843 = vadd.f32 %v842, %v780
        %v844 = vadd.f32 %v843, %v788
        %v845 = vadd.f32 %v844, %v796
        %v846 = vadd.f32 %v845, %v804
        %v847 = vrot.slane %v846, 4
        %v848 = vadd.f32 %v846, %v847
        %v849 = vrot.slane %v848, 2
        %v850 = vadd.f32 %v848, %v849
        %v851 = vrot.slane %v850, 1
        %v852 = vadd.f32 %v850, %v851
        %v853 = vadd.f32 %v685, %v693
        %v854 = vadd.f32 %v853, %v701
        %v855 = vadd.f32 %v854, %v709
        %v856 = vadd.f32 %v855, %v717
        %v857 = vadd.f32 %v856, %v725
        %v858 = vadd.f32 %v857, %v733
        %v859 = vadd.f32 %v858, %v741
        %v860 = vadd.f32 %v859, %v749
        %v861 = vadd.f32 %v860, %v757
        %v862 = vadd.f32 %v861, %v765
        %v863 = vadd.f32 %v862, %v773
        %v864 = vadd.f32 %v863, %v781
        %v865 = vadd.f32 %v864, %v789
        %v866 = vadd.f32 %v865, %v797
        %v867 = vadd.f32 %v866, %v805
        %v868 = vrot.slane %v867, 4
        %v869 = vadd.f32 %v867, %v868
        %v870 = vrot.slane %v869, 2
        %v871 = vadd.f32 %v869, %v870
        %v872 = vrot.slane %v871, 1
        %v873 = vadd.f32 %v871, %v872
        %v874 = vadd.f32 %v686, %v694
        %v875 = vadd.f32 %v874, %v702
        %v876 = vadd.f32 %v875, %v710
        %v877 = vadd.f32 %v876, %v718
        %v878 = vadd.f32 %v877, %v726
        %v879 = vadd.f32 %v878, %v734
        %v880 = vadd.f32 %v879, %v742
        %v881 = vadd.f32 %v880, %v750
        %v882 = vadd.f32 %v881, %v758
        %v883 = vadd.f32 %v882, %v766
        %v884 = vadd.f32 %v883, %v774
        %v885 = vadd.f32 %v884, %v782
        %v886 = vadd.f32 %v885, %v790
        %v887 = vadd.f32 %v886, %v798
        %v888 = vadd.f32 %v887, %v806
        %v889 = vrot.slane %v888, 4
        %v890 = vadd.f32 %v888, %v889
        %v891 = vrot.slane %v890, 2
        %v892 = vadd.f32 %v890, %v891
        %v893 = vrot.slane %v892, 1
        %v894 = vadd.f32 %v892, %v893
        %v895 = vadd.f32 %v687, %v695
        %v896 = vadd.f32 %v895, %v703
        %v897 = vadd.f32 %v896, %v711
        %v898 = vadd.f32 %v897, %v719
        %v899 = vadd.f32 %v898, %v727
        %v900 = vadd.f32 %v899, %v735
        %v901 = vadd.f32 %v900, %v743
        %v902 = vadd.f32 %v901, %v751
        %v903 = vadd.f32 %v902, %v759
        %v904 = vadd.f32 %v903, %v767
        %v905 = vadd.f32 %v904, %v775
        %v906 = vadd.f32 %v905, %v783
        %v907 = vadd.f32 %v906, %v791
        %v908 = vadd.f32 %v907, %v799
        %v909 = vadd.f32 %v908, %v807
        %v910 = vrot.slane %v909, 4
        %v911 = vadd.f32 %v909, %v910
        %v912 = vrot.slane %v911, 2
        %v913 = vadd.f32 %v911, %v912
        %v914 = vrot.slane %v913, 1
        %v915 = vadd.f32 %v913, %v914
        %v916 = vadd.f32 %v688, %v696
        %v917 = vadd.f32 %v916, %v704
        %v918 = vadd.f32 %v917, %v712
        %v919 = vadd.f32 %v918, %v720
        %v920 = vadd.f32 %v919, %v728
        %v921 = vadd.f32 %v920, %v736
        %v922 = vadd.f32 %v921, %v744
        %v923 = vadd.f32 %v922, %v752
        %v924 = vadd.f32 %v923, %v760
        %v925 = vadd.f32 %v924, %v768
        %v926 = vadd.f32 %v925, %v776
        %v927 = vadd.f32 %v926, %v784
        %v928 = vadd.f32 %v927, %v792
        %v929 = vadd.f32 %v928, %v800
        %v930 = vadd.f32 %v929, %v808
        %v931 = vrot.slane %v930, 4
        %v932 = vadd.f32 %v930, %v931
        %v933 = vrot.slane %v932, 2
        %v934 = vadd.f32 %v932, %v933
        %v935 = vrot.slane %v934, 1
        %v936 = vadd.f32 %v934, %v935
        %v937 = vadd.f32 %v689, %v697
        %v938 = vadd.f32 %v937, %v705
        %v939 = vadd.f32 %v938, %v713
        %v940 = vadd.f32 %v939, %v721
        %v941 = vadd.f32 %v940, %v729
        %v942 = vadd.f32 %v941, %v737
        %v943 = vadd.f32 %v942, %v745
        %v944 = vadd.f32 %v943, %v753
        %v945 = vadd.f32 %v944, %v761
        %v946 = vadd.f32 %v945, %v769
        %v947 = vadd.f32 %v946, %v777
        %v948 = vadd.f32 %v947, %v785
        %v949 = vadd.f32 %v948, %v793
        %v950 = vadd.f32 %v949, %v801
        %v951 = vadd.f32 %v950, %v809
        %v952 = vrot.slane %v951, 4
        %v953 = vadd.f32 %v951, %v952
        %v954 = vrot.slane %v953, 2
        %v955 = vadd.f32 %v953, %v954
        %v956 = vrot.slane %v955, 1
        %v957 = vadd.f32 %v955, %v956
        %v958 = vadd.f32 %v690, %v698
        %v959 = vadd.f32 %v958, %v706
        %v960 = vadd.f32 %v959, %v714
        %v961 = vadd.f32 %v960, %v722
        %v962 = vadd.f32 %v961, %v730
        %v963 = vadd.f32 %v962, %v738
        %v964 = vadd.f32 %v963, %v746
        %v965 = vadd.f32 %v964, %v754
        %v966 = vadd.f32 %v965, %v762
        %v967 = vadd.f32 %v966, %v770
        %v968 = vadd.f32 %v967, %v778
        %v969 = vadd.f32 %v968, %v786
        %v970 = vadd.f32 %v969, %v794
        %v971 = vadd.f32 %v970, %v802
        %v972 = vadd.f32 %v971, %v810
        %v973 = vrot.slane %v972, 4
        %v974 = vadd.f32 %v972, %v973
        %v975 = vrot.slane %v974, 2
        %v976 = vadd.f32 %v974, %v975
        %v977 = vrot.slane %v976, 1
        %v978 = vadd.f32 %v976, %v977
        %v979 = vstv %s346
        %v980 = vadd.f32 %v831, %v979
        %v981 = vadd.f32 %v852, %v979
        %v982 = vadd.f32 %v873, %v979
        %v983 = vadd.f32 %v894, %v979
        %v984 = vadd.f32 %v915, %v979
        %v985 = vadd.f32 %v936, %v979
        %v986 = vadd.f32 %v957, %v979
        %v987 = vadd.f32 %v978, %v979
        %v988 = vxor.u32 %v980, 2147483648
        %v989 = vxor.u32 %v981, 2147483648
        %v990 = vxor.u32 %v982, 2147483648
        %v991 = vxor.u32 %v983, 2147483648
        %v992 = vxor.u32 %v984, 2147483648
        %v993 = vxor.u32 %v985, 2147483648
        %v994 = vxor.u32 %v986, 2147483648
        %v995 = vxor.u32 %v987, 2147483648
        %v996 = vmul.f32 %v988, 1.442695
        %v997 = vpow.pop %v996
        %v998 = vmul.f32 %v989, 1.442695
        %v999 = vpow.pop %v998
        %v1000 = vmul.f32 %v990, 1.442695
        %v1001 = vpow.pop %v1000
        %v1002 = vmul.f32 %v991, 1.442695
        %v1003 = vpow.pop %v1002
        %v1004 = vmul.f32 %v992, 1.442695
        %v1005 = vpow.pop %v1004
        %v1006 = vmul.f32 %v993, 1.442695
        %v1007 = vpow.pop %v1006
        %v1008 = vmul.f32 %v994, 1.442695
        %v1009 = vpow.pop %v1008
        %v1010 = vmul.f32 %v995, 1.442695
        %v1011 = vpow.pop %v1010
        %v1012 = vadd.f32 %v997, 1.0
        %v1013 = vadd.f32 %v999, 1.0
        %v1014 = vadd.f32 %v1001, 1.0
        %v1015 = vadd.f32 %v1003, 1.0
        %v1016 = vadd.f32 %v1005, 1.0
        %v1017 = vadd.f32 %v1007, 1.0
        %v1018 = vadd.f32 %v1009, 1.0
        %v1019 = vadd.f32 %v1011, 1.0
        %v1020 = vrcp.pop %v1012
        %v1021 = vmul.f32 1.0, %v1020
        %v1022 = vrcp.pop %v1013
        %v1023 = vmul.f32 1.0, %v1022
        %v1024 = vrcp.pop %v1014
        %v1025 = vmul.f32 1.0, %v1024
        %v1026 = vrcp.pop %v1015
        %v1027 = vmul.f32 1.0, %v1026
        %v1028 = vrcp.pop %v1016
        %v1029 = vmul.f32 1.0, %v1028
        %v1030 = vrcp.pop %v1017
        %v1031 = vmul.f32 1.0, %v1030
        %v1032 = vrcp.pop %v1018
        %v1033 = vmul.f32 1.0, %v1032
        %v1034 = vrcp.pop %v1019
        %v1035 = vmul.f32 1.0, %v1034
        %v1044 = vcombine.low %v1021, %v1023
        %v1045 = vcombine.low %v1025, %v1027
        %v1046 = vcombine.low %v1029, %v1031
        %v1047 = vcombine.low %v1033, %v1035
        %v1049 = vunpack.c.l.s4 1966171168
        %v1050 = vunpack.c.0.s8 %v1049
        %v1051 = vlaneseq
        %v1052 = vshrl.u32 %v1051, 7
        %v1053 = vsub.s32 %v1050, %v1052
        %v1054 = vrot.slane %v1044, %v1053
        %v1056 = vunpack.c.l.s4 1966171168
        %v1057 = vunpack.c.0.s8 %v1056
        %v1058 = vlaneseq
        %v1059 = vshrl.u32 %v1058, 7
        %v1060 = vsub.s32 %v1057, %v1059
        %v1061 = vrot.slane %v1045, %v1060
        %v1063 = vunpack.c.l.s4 1966171168
        %v1064 = vunpack.c.0.s8 %v1063
        %v1065 = vlaneseq
        %v1066 = vshrl.u32 %v1065, 7
        %v1067 = vsub.s32 %v1064, %v1066
        %v1068 = vrot.slane %v1046, %v1067
        %v1070 = vunpack.c.l.s4 1966171168
        %v1071 = vunpack.c.0.s8 %v1070
        %v1072 = vlaneseq
        %v1073 = vshrl.u32 %v1072, 7
        %v1074 = vsub.s32 %v1071, %v1073
        %v1075 = vrot.slane %v1047, %v1074
        %v1076 = vcombine.low %v1054, %v1061
        %v1077 = vcombine.low %v1068, %v1075
        %v1079 = vunpack.c.l.s4 1966171168
        %v1080 = vunpack.c.0.s8 %v1079
        %v1081 = vlaneseq
        %v1082 = vshrl.u32 %v1081, 7
        %v1083 = vsub.s32 %v1080, %v1082
        %v1084 = vrot.slane %v1076, %v1083
        %v1086 = vunpack.c.l.s4 1966171168
        %v1087 = vunpack.c.0.s8 %v1086
        %v1088 = vlaneseq
        %v1089 = vshrl.u32 %v1088, 7
        %v1090 = vsub.s32 %v1087, %v1089
        %v1091 = vrot.slane %v1077, %v1090
        %v1092 = vcombine.low %v1084, %v1091
        %1094 = vst [vmem:[%s195] sm:$0xff] %v1092
        %s1095 = sand.u32 %s97, 1
        %s1096 = scalar_lea.sflag [#allocation5], %s1095
        %s1097 = sand.u32 %s97, 1
        %s1098 = smul.addr %s1097, 8
        %s1099 = scalar_lea.vmem [#allocation6], %s1098
        // Predicated region
        $region37: #{tpu_custom_call.1} parent=31 // pred_check
          %p1100 = pneg %p107
        $region38: #{tpu_custom_call.1} parent=31 // pred_check_branch
          %1102 = sbr.rel (%p1100) target = $region40
        $region39: #{tpu_custom_call.1} parent=31 // pred_region
          %s1103 = smul.u32 8, %s21
          %s1105 = ssub.s32 128, 128
          %1106 = vsyncadd %s1096, %s1105
          %s1107 = smul.addr %s1103, 16
          %s1108 = scalar_lea.hbm %s3, %s1107
          %s1110 = sshll.u32 %s1099, 4
          %s1111 = int_to_ptr.vmem [resolvable:$true] %s1110
          %1113 = dma.vmem_to_hbm [thread:$0]  %s1111, 128, %s1108, %s1096
        $region40: #{tpu_custom_call.1} parent=31 // pred_fallthru
          _
      $region32: #{tpu_custom_call.1} parent=5 // pred_fallthru
        _
      %p1114 = scmp.le.s32.totalorder 2, %s16
      // Predicated region
      $region41: #{tpu_custom_call.1} parent=5 // pred_check
        %p1115 = pneg %p1114
      $region42: #{tpu_custom_call.1} parent=5 // pred_check_branch
        %1117 = sbr.rel (%p1115) target = $region44
      $region43: #{tpu_custom_call.1} parent=5 // pred_region
        %s1118 = ssub.s32 %s16, 2
        // Predicated region
        $region45: #{tpu_custom_call.1} parent=43 // pred_check
          %p1119 = pneg %p113
        $region46: #{tpu_custom_call.1} parent=43 // pred_check_branch
          %1121 = sbr.rel (%p1119) target = $region48
        $region47: #{tpu_custom_call.1} parent=43 // pred_region
          %s1122 = sand.u32 %s98, 1
          %s1123 = scalar_lea.sflag [#allocation5], %s1122
          %s1124 = sand.u32 %s98, 1
          %s1125 = smul.addr %s1124, 8
          %s1126 = scalar_lea.vmem [#allocation6], %s1125
          %1127 = dma.done %s1123, 128
        $region48: #{tpu_custom_call.1} parent=43 // pred_fallthru
          _
      $region44: #{tpu_custom_call.1} parent=5 // pred_fallthru
        _
    $region6: #{tpu_custom_call.1} parent=1 // loop_footer
      %s20 = sadd.s32 1, %s16
    $region7: #{tpu_custom_call.1} parent=1 // loop_footer_branch
      %15 = sbr.rel target = $region3
    $region8: #{tpu_custom_call.1} parent=1 // loop_exit
      _
    %1128 = vsyncpa [#allocation4], 1
    %s1129 = scalar_lea.sflag [#allocation4], 1
    %1130 = vsyncpa %s1129, 1
    %1131 = vsyncpa [#allocation5], 1
    %s1132 = scalar_lea.sflag [#allocation5], 1
    %1133 = vsyncpa %s1132, 1

</llo_original>
